<compile_context>
chip_gen: v7x
topology: tpu7x:2x2x1
jax: 0.10.0
libtpu: 0.0.40
codegen_flags: <defaults>
</compile_context>

<pallas_src>
import jax
import jax.numpy as jnp
import numpy as np
from jax.experimental import pallas as pl
from jax.experimental.pallas import tpu as pltpu


def gcn_kernel(x_ref, w1_ref, b1_ref, w2_ref, b2_ref, o_ref):
    # x_ref:  (TB, N, Fin)  block of batch rows (node features)
    # w1_ref: (Fin, H)      GCN_l1 weight        b1_ref: (1, H)
    # w2_ref: (H, O)        GCN_l2 weight        b2_ref: (1, O)
    # o_ref:  (TB, N, O)    output block
    x = x_ref[...]                                              # (TB, N, Fin)
    n = x.shape[1]

    # A_norm = J/N  =>  GCN aggregation == mean over nodes (XLU/VPU reduce,
    # no adjacency matmul needed).
    x_mean = jnp.sum(x, axis=1) * (1.0 / n)                     # (TB, Fin)

    # Layer 1: every row of H1 is identical per batch element, so one row
    # per batch element suffices.
    h1 = jnp.dot(x_mean, w1_ref[...],
                 preferred_element_type=jnp.float32) + b1_ref[0]   # (TB, H)

    # Layer 2: the second aggregation is the identity on the (already mean)
    # row, so it collapses to a single (TB, H) @ (H, O) matmul.
    h2 = jnp.dot(h1, w2_ref[...],
                 preferred_element_type=jnp.float32) + b2_ref[0]   # (TB, O)

    # Broadcast each batch element's row to all N nodes (lane-dense O=128).
    o_ref[...] = jnp.broadcast_to(h2[:, None, :], o_ref.shape).astype(o_ref.dtype)


def gcn_forward(user_batch, w1, b1, w2, b2, *, rows_per_step=None):
    B, N, Fin = user_batch.shape
    H = w1.shape[1]
    O = w2.shape[1]
    assert w1.shape == (Fin, H) and w2.shape == (H, O)
    assert b1.shape == (H,) and b2.shape == (O,)

    # Fold the whole (small) batch into one grid step; for large B, block it
    # into `rows_per_step` rows per step (leading dim only — last two block
    # dims always equal the full array dims, so the (8,128) rule is satisfied).
    tb = B if rows_per_step is None else max(1, min(rows_per_step, B))
    grid = (pl.cdiv(B, tb),)

    return pl.pallas_call(
        gcn_kernel,
        out_shape=jax.ShapeDtypeStruct((B, N, O), user_batch.dtype),
        grid=grid,
        in_specs=[
            pl.BlockSpec((tb, N, Fin), lambda b: (b, 0, 0)),   # node features
            pl.BlockSpec((Fin, H), lambda b: (0, 0)),          # W1 (resident)
            pl.BlockSpec((1, H), lambda b: (0, 0)),            # b1
            pl.BlockSpec((H, O), lambda b: (0, 0)),            # W2 (resident)
            pl.BlockSpec((1, O), lambda b: (0, 0)),            # b2
        ],
        out_specs=pl.BlockSpec((tb, N, O), lambda b: (b, 0, 0)),
        compiler_params=pltpu.CompilerParams(
            dimension_semantics=("parallel",)),
    )(user_batch, w1, b1.reshape(1, H), w2, b2.reshape(1, O))


def build_normalized_adjacency(num_nodes, dtype=jnp.float32):
    """Dense D^{-1/2}(A+I)D^{-1/2} for the complete graph built by
    GCN.cal_edge_index plus GCNConv's default self loops (equals J/N).
    Vectorized, reference-only (the kernel no longer consumes it)."""
    a = np.ones((num_nodes, num_nodes), np.float32)        # complete graph + I
    d_inv_sqrt = 1.0 / np.sqrt(a.sum(axis=1))
    return jnp.asarray(d_inv_sqrt[:, None] * a * d_inv_sqrt[None, :], dtype)


def gcn_reference(user_batch, w1, b1, w2, b2):
    """Pure-JAX transcription of the PyTorch forward with an explicit dense
    normalized adjacency (for verification of the structural exploit)."""
    _, N, _ = user_batch.shape
    a_norm = build_normalized_adjacency(N, jnp.float32)
    h1 = jnp.einsum("ij,bjf->bif", a_norm, user_batch @ w1) + b1
    h2 = jnp.einsum("ij,bjf->bif", a_norm, h1 @ w2) + b2
    return h2.astype(user_batch.dtype)


if __name__ == "__main__":
    # Small shapes consistent with the module defaults.
    batch_size = 2
    num_nodes = 16          # len_user_data (nodes per batch element)
    in_feat_dim = 12
    hid_feat_dim = 256
    out_feat_dim = 128

    key = jax.random.PRNGKey(0)
    k_x, k_w1, k_b1, k_w2, k_b2 = jax.random.split(key, 5)

    user_batch = jax.random.uniform(
        k_x, (batch_size, num_nodes, in_feat_dim), dtype=jnp.float32)
    # glorot-ish init (scale by fan-in) keeps activations O(1)
    s1 = 1.0 / np.sqrt(in_feat_dim)
    s2 = 1.0 / np.sqrt(hid_feat_dim)
    w1 = jax.random.uniform(k_w1, (in_feat_dim, hid_feat_dim),
                            minval=-s1, maxval=s1, dtype=jnp.float32)
    b1 = jax.random.uniform(k_b1, (hid_feat_dim,),
                            minval=-s1, maxval=s1, dtype=jnp.float32)
    w2 = jax.random.uniform(k_w2, (hid_feat_dim, out_feat_dim),
                            minval=-s2, maxval=s2, dtype=jnp.float32)
    b2 = jax.random.uniform(k_b2, (out_feat_dim,),
                            minval=-s2, maxval=s2, dtype=jnp.float32)

    out = jax.block_until_ready(gcn_forward(user_batch, w1, b1, w2, b2))
    ref = jax.block_until_ready(gcn_reference(user_batch, w1, b1, w2, b2))

    assert out.shape == (batch_size, num_nodes, out_feat_dim)
    # All-f32 MXU path: tight tolerance (was 1e-2, unnecessarily loose).
    assert jnp.allclose(out, ref, rtol=1e-5, atol=1e-5), "mismatch vs reference"

    print("KERNEL_OK")
</pallas_src>

<mosaic_0001>
module attributes {stable_mosaic.version = 11 : i64} {
  func.func @gcn_kernel(%arg0: i32, %arg1: memref<2x16x12xf32, #tpu.memory_space<vmem>>, %arg2: memref<12x256xf32, #tpu.memory_space<vmem>>, %arg3: memref<1x256xf32, #tpu.memory_space<vmem>>, %arg4: memref<256x128xf32, #tpu.memory_space<vmem>>, %arg5: memref<1x128xf32, #tpu.memory_space<vmem>>, %arg6: memref<2x16x128xf32, #tpu.memory_space<vmem>>) attributes {dimension_semantics = [#tpu.dimension_semantics<parallel>], iteration_bounds = array<i64: 1>, scalar_prefetch = 0 : i64, scratch_operands = 0 : i64, tpu.core_type = #tpu.core_type<tc>, window_params = [{transform_indices = @transform_0, window_bounds = array<i64: 2, 16, 12>}, {pipeline_mode = #tpu.pipeline_mode<synchronous>, transform_indices = @transform_1, window_bounds = array<i64: 12, 256>}, {pipeline_mode = #tpu.pipeline_mode<synchronous>, transform_indices = @transform_2, window_bounds = array<i64: 1, 256>}, {pipeline_mode = #tpu.pipeline_mode<synchronous>, transform_indices = @transform_3, window_bounds = array<i64: 256, 128>}, {pipeline_mode = #tpu.pipeline_mode<synchronous>, transform_indices = @transform_4, window_bounds = array<i64: 1, 128>}, {transform_indices = @transform_5, window_bounds = array<i64: 2, 16, 128>}]} {
    %c0 = arith.constant 0 : index
    %c0_0 = arith.constant 0 : index
    %c0_1 = arith.constant 0 : index
    %0 = vector.load %arg1[%c0, %c0_0, %c0_1] : memref<2x16x12xf32, #tpu.memory_space<vmem>>, vector<2x16x12xf32>
    %cst = arith.constant dense<0.000000e+00> : vector<2x12xf32>
    %1 = vector.multi_reduction <add>, %0, %cst [1] : vector<2x16x12xf32> to vector<2x12xf32>
    %cst_2 = arith.constant 6.250000e-02 : f32
    %2 = vector.broadcast %cst_2 : f32 to vector<2x12xf32>
    %3 = arith.mulf %1, %2 : vector<2x12xf32>
    %c0_3 = arith.constant 0 : index
    %c0_4 = arith.constant 0 : index
    %4 = vector.load %arg2[%c0_3, %c0_4] : memref<12x256xf32, #tpu.memory_space<vmem>>, vector<12x256xf32>
    %cst_5 = arith.constant dense<0.000000e+00> : vector<2x256xf32>
    %5 = tpu.matmul %3, %4, %cst_5 {dimension_numbers = #tpu.dot_dimension_numbers<[1], [0], [0], [1], [0, 0, 1, 1], [], []>} : vector<2x12xf32>, vector<12x256xf32>, vector<2x256xf32> -> vector<2x256xf32>
    %c0_6 = arith.constant 0 : index
    %c0_7 = arith.constant 0 : index
    %6 = vector.load %arg3[%c0_6, %c0_7] : memref<1x256xf32, #tpu.memory_space<vmem>>, vector<1x256xf32>
    %7 = vector.shape_cast %6 : vector<1x256xf32> to vector<256xf32>
    %8 = vector.shape_cast %7 : vector<256xf32> to vector<1x256xf32>
    %9 = vector.broadcast %8 : vector<1x256xf32> to vector<2x256xf32>
    %10 = arith.addf %5, %9 : vector<2x256xf32>
    %c0_8 = arith.constant 0 : index
    %c0_9 = arith.constant 0 : index
    %11 = vector.load %arg4[%c0_8, %c0_9] : memref<256x128xf32, #tpu.memory_space<vmem>>, vector<256x128xf32>
    %cst_10 = arith.constant dense<0.000000e+00> : vector<2x128xf32>
    %12 = tpu.matmul %10, %11, %cst_10 {dimension_numbers = #tpu.dot_dimension_numbers<[1], [0], [0], [1], [0, 0, 1, 1], [], []>} : vector<2x256xf32>, vector<256x128xf32>, vector<2x128xf32> -> vector<2x128xf32>
    %c0_11 = arith.constant 0 : index
    %c0_12 = arith.constant 0 : index
    %13 = vector.load %arg5[%c0_11, %c0_12] : memref<1x128xf32, #tpu.memory_space<vmem>>, vector<1x128xf32>
    %14 = vector.shape_cast %13 : vector<1x128xf32> to vector<128xf32>
    %15 = vector.shape_cast %14 : vector<128xf32> to vector<1x128xf32>
    %16 = vector.broadcast %15 : vector<1x128xf32> to vector<2x128xf32>
    %17 = arith.addf %12, %16 : vector<2x128xf32>
    %18 = vector.shape_cast %17 : vector<2x128xf32> to vector<2x1x128xf32>
    %19 = vector.shape_cast %18 : vector<2x1x128xf32> to vector<2x1x128xf32>
    %20 = vector.broadcast %19 : vector<2x1x128xf32> to vector<2x16x128xf32>
    %c0_13 = arith.constant 0 : index
    %c0_14 = arith.constant 0 : index
    %c0_15 = arith.constant 0 : index
    %21 = vector.load %arg6[%c0_13, %c0_14, %c0_15] : memref<2x16x128xf32, #tpu.memory_space<vmem>>, vector<2x16x128xf32>
    tpu.vector_store %arg6[%c0_13, %c0_14, %c0_15], %20 {strides = array<i32>} : memref<2x16x128xf32, #tpu.memory_space<vmem>>, vector<2x16x128xf32>,
    return
  }
  func.func @transform_0(%arg0: i32) -> (i32, i32, i32) {
    %c0_i32 = arith.constant 0 : i32
    %c0_i32_0 = arith.constant 0 : i32
    %c0_i32_1 = arith.constant 0 : i32
    return %arg0, %c0_i32, %c0_i32_0 : i32, i32, i32
  }
  func.func @transform_1(%arg0: i32) -> (i32, i32) {
    %c0_i32 = arith.constant 0 : i32
    %c0_i32_0 = arith.constant 0 : i32
    %c0_i32_1 = arith.constant 0 : i32
    return %c0_i32, %c0_i32_0 : i32, i32
  }
  func.func @transform_2(%arg0: i32) -> (i32, i32) {
    %c0_i32 = arith.constant 0 : i32
    %c0_i32_0 = arith.constant 0 : i32
    %c0_i32_1 = arith.constant 0 : i32
    return %c0_i32, %c0_i32_0 : i32, i32
  }
  func.func @transform_3(%arg0: i32) -> (i32, i32) {
    %c0_i32 = arith.constant 0 : i32
    %c0_i32_0 = arith.constant 0 : i32
    %c0_i32_1 = arith.constant 0 : i32
    return %c0_i32, %c0_i32_0 : i32, i32
  }
  func.func @transform_4(%arg0: i32) -> (i32, i32) {
    %c0_i32 = arith.constant 0 : i32
    %c0_i32_0 = arith.constant 0 : i32
    %c0_i32_1 = arith.constant 0 : i32
    return %c0_i32, %c0_i32_0 : i32, i32
  }
  func.func @transform_5(%arg0: i32) -> (i32, i32, i32) {
    %c0_i32 = arith.constant 0 : i32
    %c0_i32_0 = arith.constant 0 : i32
    %c0_i32_1 = arith.constant 0 : i32
    return %arg0, %c0_i32, %c0_i32_0 : i32, i32, i32
  }
}

</mosaic_0001>

<llo_original>
// kernel: tpu_custom_call.1
$region0: #{tpu_custom_call.1}
  #allocation0 [shape = 'u32[]', space=smem, size = 0x4, offset = 0x4, fixed_abs, tag = 'smem constant byte address 0x4 - core index']
  #allocation1 [shape = 'u32[144,128]{1,0:T(1,128)}', space=vmem, size = 0x12000, scoped, tag = 'internal scratch']
  %s0 = inlined_call_operand.vmem [shape: f32[2,16,12], index: 0, kind: input, shape index: {}]
  %s1 = inlined_call_operand.vmem [shape: f32[12,256], index: 1, kind: input, shape index: {}]
  %s2 = inlined_call_operand.vmem [shape: f32[1,256], index: 2, kind: input, shape index: {}]
  %s3 = inlined_call_operand.hbm [shape: f32[256,128], index: 3, kind: input, shape index: {}]
  %s4 = inlined_call_operand.vmem [shape: f32[1,128], index: 4, kind: input, shape index: {}]
  %s5 = inlined_call_operand.hbm [shape: f32[2,16,128], index: 5, kind: output, shape index: {}]
  %s6 = sld [smem:[#allocation0]]
  $region34: #{tpu_custom_call.1} parent=0
    _
  %s8 = ssub.s32 1, %s6
  %s9 = scalar_select 0, %s8, %s6
  $region1: #{tpu_custom_call.1} parent=0
    #allocation2 [shape = 'u8[131072]{0}', space=vmem, size = 0x20000, scoped, tag = 'input window, operand 3, single buffered']
    #allocation3 [shape = 's32[1]{0}', space=sflag, size = 0x4, scoped, tag = 'scoped memory for tpu_custom_call.1']
    #allocation4 [shape = 's32[1]{0}', space=sflag, size = 0x4, scoped, tag = 'scoped memory for tpu_custom_call.1']
    #allocation5 [shape = 'u8[16384]{0}', space=vmem, size = 0x4000, scoped, tag = 'output window, operand 0, single buffered']
    %10 = vsyncpa [#allocation3], 0
    %11 = vsyncpa [#allocation4], 0
    // Predicated region
    $region2: #{tpu_custom_call.1} parent=1 // pred_check
      _
    $region3: #{tpu_custom_call.1} parent=1 // pred_check_branch
      %13 = sbr.rel (0) target = $region5
    $region4: #{tpu_custom_call.1} parent=1 // pred_region
      _
    $region5: #{tpu_custom_call.1} parent=1 // pred_fallthru
      _
    // Predicated region
    $region6: #{tpu_custom_call.1} parent=1 // pred_check
      _
    $region7: #{tpu_custom_call.1} parent=1 // pred_check_branch
      %15 = sbr.rel (0) target = $region9
    $region8: #{tpu_custom_call.1} parent=1 // pred_region
      _
    $region9: #{tpu_custom_call.1} parent=1 // pred_fallthru
      _
    // Predicated region
    $region10: #{tpu_custom_call.1} parent=1 // pred_check
      _
    $region11: #{tpu_custom_call.1} parent=1 // pred_check_branch
      %17 = sbr.rel (0) target = $region13
    $region12: #{tpu_custom_call.1} parent=1 // pred_region
      _
    $region13: #{tpu_custom_call.1} parent=1 // pred_fallthru
      _
    // Predicated region
    $region14: #{tpu_custom_call.1} parent=1 // pred_check
      _
    $region15: #{tpu_custom_call.1} parent=1 // pred_check_branch
      %19 = sbr.rel (0) target = $region17
    $region16: #{tpu_custom_call.1} parent=1 // pred_region
      %s21 = ssub.s32 4096, 4096
      %22 = vsyncadd [#allocation3], %s21
      %s23 = sshll.u32 [#allocation2], 4
      %s24 = int_to_ptr.vmem [resolvable:$true] %s23
      %29 = dma.hbm_to_vmem [thread:$0]  %s3, 4096, %s24, [#allocation3], 128, 128, 8
    $region17: #{tpu_custom_call.1} parent=1 // pred_fallthru
      _
    // Predicated region
    $region18: #{tpu_custom_call.1} parent=1 // pred_check
      _
    $region19: #{tpu_custom_call.1} parent=1 // pred_check_branch
      %31 = sbr.rel (0) target = $region21
    $region20: #{tpu_custom_call.1} parent=1 // pred_region
      _
    $region21: #{tpu_custom_call.1} parent=1 // pred_fallthru
      _
    // Predicated region
    $region22: #{tpu_custom_call.1} parent=1 // pred_check
      _
    $region23: #{tpu_custom_call.1} parent=1 // pred_check_branch
      %33 = sbr.rel (0) target = $region25
    $region24: #{tpu_custom_call.1} parent=1 // pred_region
      %34 = dma.done [#allocation3], 4096
    $region25: #{tpu_custom_call.1} parent=1 // pred_fallthru
      _
    %v35 = vld [vmem:[%s0] sm:$0xff]
    %v36 = vld [vmem:[%s0 + $0x8] sm:$0xff]
    %v37 = vld [vmem:[%s0 + $0x10] sm:$0xff]
    %v38 = vld [vmem:[%s0 + $0x18] sm:$0xff]
    %vm39 = vcmask 97280
    %v40 = vsel %vm39, %v35, 0.0
    %v41 = vsel %vm39, %v36, 0.0
    %v42 = vadd.f32 %v40, %v41
    %v43 = vrot.slane %v42, 4
    %v44 = vadd.f32 %v42, %v43
    %v45 = vrot.slane %v44, 2
    %v46 = vadd.f32 %v44, %v45
    %v47 = vrot.slane %v46, 1
    %v48 = vadd.f32 %v46, %v47
    %v49 = vsel %vm39, %v37, 0.0
    %v50 = vsel %vm39, %v38, 0.0
    %v51 = vadd.f32 %v49, %v50
    %v52 = vrot.slane %v51, 4
    %v53 = vadd.f32 %v51, %v52
    %v54 = vrot.slane %v53, 2
    %v55 = vadd.f32 %v53, %v54
    %v56 = vrot.slane %v55, 1
    %v57 = vadd.f32 %v55, %v56
    %v58 = vmul.f32 %v48, 0.0625
    %v59 = vmul.f32 %v57, 0.0625
    %v60 = vld [vmem:[%s1] sm:$0xff]
    %v61 = vld [vmem:[%s1 + $0x8] sm:$0xff]
    %v62 = vld [vmem:[%s1 + $0x10] sm:$0xf]
    %v63 = vld [vmem:[%s1 + $0x18] sm:$0xf]
    %v64 = vld [vmem:[%s2] sm:$0x3]
    %v66 = vlaneseq
    %v67 = vshrl.u32 %v66, 7
    %v68 = vsub.s32 0, %v67
    %v69 = vrot.slane %v64, %v68
    %v70 = vlaneseq
    %v71 = vshrl.u32 %v70, 7
    %v72 = vsub.s32 1, %v71
    %v73 = vrot.slane %v64, %v72
    %vm78 = vcmask 1041409
    %v79 = vsel %vm78, %v59, %v58
    %v80 = vsel %vm39, %v79, 0
    %vm82 = vcmask 1043456
    %v84 = vsel %vm82, %v62, 0
    %v87 = vsel %vm82, %v63, 0
    %89 = vmatprep.subr.mxu0 %v61
    %90 = vmatpush1.msra.mxu0 %v60
    %91 = vmatprep.subr.mxu0 %v87
    %92 = vmatpush1.msra.mxu0 %v84
    %93 = vmatprep.subr.mxu0 0.0
    %94 = vmatpush1.msra.mxu0 0.0
    %95 = vmatprep.subr.mxu0 0.0
    %96 = vmatpush1.msra.mxu0 0.0
    %97 = vmatprep.subr.mxu0 0.0
    %98 = vmatpush1.msra.mxu0 0.0
    %99 = vmatprep.subr.mxu0 0.0
    %100 = vmatpush1.msra.mxu0 0.0
    %101 = vmatprep.subr.mxu0 0.0
    %102 = vmatpush1.msra.mxu0 0.0
    %103 = vmatprep.subr.mxu0 0.0
    %104 = vmatpush1.msra.mxu0 0.0
    %105 = vmatprep.subr.mxu0 0.0
    %106 = vmatpush1.msra.mxu0 0.0
    %107 = vmatprep.subr.mxu0 0.0
    %108 = vmatpush1.msra.mxu0 0.0
    %109 = vmatprep.subr.mxu0 0.0
    %110 = vmatpush1.msra.mxu0 0.0
    %111 = vmatprep.subr.mxu0 0.0
    %112 = vmatpush1.msra.mxu0 0.0
    %113 = vmatprep.subr.mxu0 0.0
    %114 = vmatpush1.msra.mxu0 0.0
    %115 = vmatprep.subr.mxu0 0.0
    %116 = vmatpush1.msra.mxu0 0.0
    %117 = vmatprep.subr.mxu0 0.0
    %118 = vmatpush1.msra.mxu0 0.0
    %119 = vmatprep.subr.mxu0 0.0
    %120 = vmatpush1.msra.mxu0 0.0
    %121 = vmatprep.subr.mxu0 0.0
    %122 = vmatpush1.msra.mxu0 0.0
    %123 = vmatprep.subr.mxu0 0.0
    %124 = vmatpush1.msra.mxu0 0.0
    %125 = vmatprep.subr.mxu0 0.0
    %126 = vmatpush1.msra.mxu0 0.0
    %127 = vmatprep.subr.mxu0 0.0
    %128 = vmatpush1.msra.mxu0 0.0
    %129 = vmatprep.subr.mxu0 0.0
    %130 = vmatpush1.msra.mxu0 0.0
    %131 = vmatprep.subr.mxu0 0.0
    %132 = vmatpush1.msra.mxu0 0.0
    %133 = vmatprep.subr.mxu0 0.0
    %134 = vmatpush1.msra.mxu0 0.0
    %135 = vmatprep.subr.mxu0 0.0
    %136 = vmatpush1.msra.mxu0 0.0
    %137 = vmatprep.subr.mxu0 0.0
    %138 = vmatpush1.msra.mxu0 0.0
    %139 = vmatprep.subr.mxu0 0.0
    %140 = vmatpush1.msra.mxu0 0.0
    %141 = vmatprep.subr.mxu0 0.0
    %142 = vmatpush1.msra.mxu0 0.0
    %143 = vmatprep.subr.mxu0 0.0
    %144 = vmatpush1.msra.mxu0 0.0
    %145 = vmatprep.subr.mxu0 0.0
    %146 = vmatpush1.msra.mxu0 0.0
    %147 = vmatprep.subr.mxu0 0.0
    %148 = vmatpush1.msra.mxu0 0.0
    %149 = vmatprep.subr.mxu0 0.0
    %150 = vmatpush1.msra.mxu0 0.0
    %151 = vmatprep.subr.mxu0 0.0
    %152 = vmatpush1.msra.mxu0 0.0
    %153 = vmatprep.mubr.f32.mxu0 0.0
    %154 = vmatmul.mubr.f32.gmra.mrb[0].mxu0 %v80
    %v155 = vpop.f32.mrb[0].mxu0
    %v156 = vadd.f32 %v69, %v155
    %v157 = vpop.f32.mrb[0].mxu0
    %v158 = vadd.f32 %v73, %v157
    %159 = vdwg.mxu0
    %v160 = vld [vmem:[#allocation2] sm:$0xff]
    %v161 = vld [vmem:[#allocation2 + $0x8] sm:$0xff]
    %v162 = vld [vmem:[#allocation2 + $0x10] sm:$0xff]
    %v163 = vld [vmem:[#allocation2 + $0x18] sm:$0xff]
    %v164 = vld [vmem:[#allocation2 + $0x20] sm:$0xff]
    %v165 = vld [vmem:[#allocation2 + $0x28] sm:$0xff]
    %v166 = vld [vmem:[#allocation2 + $0x30] sm:$0xff]
    %v167 = vld [vmem:[#allocation2 + $0x38] sm:$0xff]
    %v168 = vld [vmem:[#allocation2 + $0x40] sm:$0xff]
    %v169 = vld [vmem:[#allocation2 + $0x48] sm:$0xff]
    %v170 = vld [vmem:[#allocation2 + $0x50] sm:$0xff]
    %v171 = vld [vmem:[#allocation2 + $0x58] sm:$0xff]
    %v172 = vld [vmem:[#allocation2 + $0x60] sm:$0xff]
    %v173 = vld [vmem:[#allocation2 + $0x68] sm:$0xff]
    %v174 = vld [vmem:[#allocation2 + $0x70] sm:$0xff]
    %v175 = vld [vmem:[#allocation2 + $0x78] sm:$0xff]
    %v176 = vld [vmem:[#allocation2 + $0x80] sm:$0xff]
    %v177 = vld [vmem:[#allocation2 + $0x88] sm:$0xff]
    %v178 = vld [vmem:[#allocation2 + $0x90] sm:$0xff]
    %v179 = vld [vmem:[#allocation2 + $0x98] sm:$0xff]
    %v180 = vld [vmem:[#allocation2 + $0xa0] sm:$0xff]
    %v181 = vld [vmem:[#allocation2 + $0xa8] sm:$0xff]
    %v182 = vld [vmem:[#allocation2 + $0xb0] sm:$0xff]
    %v183 = vld [vmem:[#allocation2 + $0xb8] sm:$0xff]
    %v184 = vld [vmem:[#allocation2 + $0xc0] sm:$0xff]
    %v185 = vld [vmem:[#allocation2 + $0xc8] sm:$0xff]
    %v186 = vld [vmem:[#allocation2 + $0xd0] sm:$0xff]
    %v187 = vld [vmem:[#allocation2 + $0xd8] sm:$0xff]
    %v188 = vld [vmem:[#allocation2 + $0xe0] sm:$0xff]
    %v189 = vld [vmem:[#allocation2 + $0xe8] sm:$0xff]
    %v190 = vld [vmem:[#allocation2 + $0xf0] sm:$0xff]
    %v191 = vld [vmem:[#allocation2 + $0xf8] sm:$0xff]
    %v192 = vld [vmem:[%s4] sm:$0x1]
    %v194 = vlaneseq
    %v195 = vshrl.u32 %v194, 7
    %v196 = vsub.s32 0, %v195
    %v197 = vrot.slane %v192, %v196
    %199 = vmatprep.subr.mxu0 0.0
    %200 = vmatpush1.msra.mxu0 %v160
    %201 = vmatprep.subr.mxu0 0.0
    %202 = vmatpush1.msra.mxu0 %v161
    %203 = vmatprep.subr.mxu0 0.0
    %204 = vmatpush1.msra.mxu0 %v162
    %205 = vmatprep.subr.mxu0 0.0
    %206 = vmatpush1.msra.mxu0 %v163
    %207 = vmatprep.subr.mxu0 0.0
    %208 = vmatpush1.msra.mxu0 %v164
    %209 = vmatprep.subr.mxu0 0.0
    %210 = vmatpush1.msra.mxu0 %v165
    %211 = vmatprep.subr.mxu0 0.0
    %212 = vmatpush1.msra.mxu0 %v166
    %213 = vmatprep.subr.mxu0 0.0
    %214 = vmatpush1.msra.mxu0 %v167
    %215 = vmatprep.subr.mxu0 0.0
    %216 = vmatpush1.msra.mxu0 %v168
    %217 = vmatprep.subr.mxu0 0.0
    %218 = vmatpush1.msra.mxu0 %v169
    %219 = vmatprep.subr.mxu0 0.0
    %220 = vmatpush1.msra.mxu0 %v170
    %221 = vmatprep.subr.mxu0 0.0
    %222 = vmatpush1.msra.mxu0 %v171
    %223 = vmatprep.subr.mxu0 0.0
    %224 = vmatpush1.msra.mxu0 %v172
    %225 = vmatprep.subr.mxu0 0.0
    %226 = vmatpush1.msra.mxu0 %v173
    %227 = vmatprep.subr.mxu0 0.0
    %228 = vmatpush1.msra.mxu0 %v174
    %229 = vmatprep.subr.mxu0 0.0
    %230 = vmatpush1.msra.mxu0 %v175
    %231 = vmatprep.subr.mxu0 0.0
    %232 = vmatpush1.msra.mxu0 %v176
    %233 = vmatprep.subr.mxu0 0.0
    %234 = vmatpush1.msra.mxu0 %v177
    %235 = vmatprep.subr.mxu0 0.0
    %236 = vmatpush1.msra.mxu0 %v178
    %237 = vmatprep.subr.mxu0 0.0
    %238 = vmatpush1.msra.mxu0 %v179
    %239 = vmatprep.subr.mxu0 0.0
    %240 = vmatpush1.msra.mxu0 %v180
    %241 = vmatprep.subr.mxu0 0.0
    %242 = vmatpush1.msra.mxu0 %v181
    %243 = vmatprep.subr.mxu0 0.0
    %244 = vmatpush1.msra.mxu0 %v182
    %245 = vmatprep.subr.mxu0 0.0
    %246 = vmatpush1.msra.mxu0 %v183
    %247 = vmatprep.subr.mxu0 0.0
    %248 = vmatpush1.msra.mxu0 %v184
    %249 = vmatprep.subr.mxu0 0.0
    %250 = vmatpush1.msra.mxu0 %v185
    %251 = vmatprep.subr.mxu0 0.0
    %252 = vmatpush1.msra.mxu0 %v186
    %253 = vmatprep.subr.mxu0 0.0
    %254 = vmatpush1.msra.mxu0 %v187
    %255 = vmatprep.subr.mxu0 0.0
    %256 = vmatpush1.msra.mxu0 %v188
    %257 = vmatprep.subr.mxu0 0.0
    %258 = vmatpush1.msra.mxu0 %v189
    %259 = vmatprep.subr.mxu0 0.0
    %260 = vmatpush1.msra.mxu0 %v190
    %261 = vmatprep.subr.mxu0 0.0
    %262 = vmatpush1.msra.mxu0 %v191
    %263 = vmatprep.mubr.f32.mxu0 %v158
    %264 = vmatmul.mubr.f32.gmra.mrb[0].mxu0 %v156
    %v265 = vpop.f32.mrb[0].mxu0
    %v266 = vadd.f32 %v197, %v265
    %v267 = vpop.f32.mrb[0].mxu0
    %268 = vdwg.mxu0
    %v271 = vunpack.c.l.s4 1966171168
    %v272 = vunpack.c.0.s8 %v271
    %v273 = vlaneseq
    %v274 = vshrl.u32 %v273, 7
    %v275 = vsub.s32 %v272, %v274
    %v276 = vrot.slane %v266, %v275
    %v277 = vcombine.high %v276, %v276
    %v279 = vunpack.c.l.s4 1966171168
    %v280 = vunpack.c.0.s8 %v279
    %v281 = vlaneseq
    %v282 = vshrl.u32 %v281, 7
    %v283 = vsub.s32 %v280, %v282
    %v284 = vrot.slane %v276, %v283
    %v286 = vunpack.c.l.s4 1966171168
    %v287 = vunpack.c.0.s8 %v286
    %v288 = vlaneseq
    %v289 = vshrl.u32 %v288, 7
    %v290 = vsub.s32 %v287, %v289
    %v291 = vrot.slane %v277, %v290
    %v292 = vlaneseq
    %v293 = vshrl.u32 %v292, 7
    %v294 = vsub.s32 0, %v293
    %v295 = vrot.slane %v284, %v294
    %v296 = vlaneseq
    %v297 = vshrl.u32 %v296, 7
    %v298 = vsub.s32 0, %v297
    %v299 = vrot.slane %v291, %v298
    %302 = vst [vmem:[#allocation5] sm:$0xff] %v295
    %303 = vst [vmem:[#allocation5 + $0x8] sm:$0xff] %v295
    %304 = vst [vmem:[#allocation5 + $0x10] sm:$0xff] %v299
    %305 = vst [vmem:[#allocation5 + $0x18] sm:$0xff] %v299
    // Predicated region
    $region26: #{tpu_custom_call.1} parent=1 // pred_check
      _
    $region27: #{tpu_custom_call.1} parent=1 // pred_check_branch
      %307 = sbr.rel (0) target = $region29
    $region28: #{tpu_custom_call.1} parent=1 // pred_region
      %s309 = ssub.s32 512, 512
      %310 = vsyncadd [#allocation4], %s309
      %s311 = sshll.u32 [#allocation5], 4
      %s312 = int_to_ptr.vmem [resolvable:$true] %s311
      %317 = dma.vmem_to_hbm [thread:$0]  %s312, 512, %s5, [#allocation4], 128, 128, 8
    $region29: #{tpu_custom_call.1} parent=1 // pred_fallthru
      _
    // Predicated region
    $region30: #{tpu_custom_call.1} parent=1 // pred_check
      _
    $region31: #{tpu_custom_call.1} parent=1 // pred_check_branch
      %319 = sbr.rel (0) target = $region33
    $region32: #{tpu_custom_call.1} parent=1 // pred_region
      %320 = dma.done [#allocation4], 512
    $region33: #{tpu_custom_call.1} parent=1 // pred_fallthru
      _
    %321 = vsyncpa [#allocation3], 1
    %322 = vsyncpa [#allocation4], 1

</llo_original>
